<compile_context>
chip_gen: v7x
topology: tpu7x:2x2x1
jax: 0.10.0
libtpu: 0.0.40
codegen_flags: <defaults>
</compile_context>

<pallas_src>
import numpy as np
import jax
import jax.numpy as jnp
from jax.experimental import pallas as pl
from jax.experimental.pallas import tpu as pltpu


def _gaussian_kernel1d(ksize: int, sigma: float) -> np.ndarray:
    # Matches kornia.get_gaussian_kernel1d semantics.
    x = np.arange(ksize, dtype=np.float64) - ksize // 2
    if ksize % 2 == 0:
        x = x + 0.5
    g = np.exp(-(x * x) / (2.0 * sigma * sigma))
    return (g / g.sum()).astype(np.float32)


_PAD_MODE = {"reflect": "reflect", "replicate": "edge",
             "circular": "wrap", "constant": "constant"}


def unsharp_mask_pallas(image: jax.Array,
                        kernel_size=(3, 3),
                        sigma=(1.5, 1.5),
                        border_type: str = "reflect") -> jax.Array:
    """image: [B, C, H, W] float array. Returns [B, C, H, W]."""
    B, C, H, W = image.shape
    kh, kw = kernel_size
    assert kh % 2 == 1 and kw % 2 == 1, "odd kernel sizes expected"
    ph, pw = kh // 2, kw // 2

    # Compile-time separable Gaussian weights.
    ky = [float(v) for v in _gaussian_kernel1d(kh, float(sigma[0]))]
    kx = [float(v) for v in _gaussian_kernel1d(kw, float(sigma[1]))]

    N = B * C
    planes = image.reshape(N, H, W)

    # The padded tensor is the ONLY kernel input (its centre is the image).
    # TODO(synk): build the halo in VMEM scratch instead of this XLA pad to
    # drop one more HBM pass, and add halo'd row-strip tiling for planes too
    # large for a single block (needed on v7x's 64 MiB VMEM for 2k x 2k+).
    padded = jnp.pad(planes, ((0, 0), (ph, ph), (pw, pw)),
                     mode=_PAD_MODE[border_type])
    Hp, Wp = H + 2 * ph, W + 2 * pw

    # Planes per grid step: amortize per-step overhead under a VMEM budget,
    # keep >=2 grid steps for v7x megacore balance, and divide N exactly.
    bytes_per_plane = 2 * (Hp * Wp + H * W) * 4   # double-buffered in+out, f32 upper bound
    budget = 10 * 1024 * 1024
    tb_cap = max(1, budget // bytes_per_plane)
    divisors = [d for d in range(1, N + 1) if N % d == 0]
    cands = [d for d in divisors if d <= tb_cap and N // d >= 2]
    if not cands:
        cands = [d for d in divisors if d <= tb_cap] or [1]
    tb = max(cands)
    grid = (N // tb,)

    def kernel(pad_ref, out_ref):
        # Horizontal separable pass: (tb, Hp, Wp) -> (tb, Hp, W), f32 accumulation.
        hacc = kx[0] * pad_ref[:, :, 0:W].astype(jnp.float32)
        for dx in range(1, kw):
            hacc = hacc + kx[dx] * pad_ref[:, :, dx:dx + W].astype(jnp.float32)
        # Vertical pass fused with the unsharp combine.
        blur = ky[0] * hacc[:, 0:H, :]
        for dy in range(1, kh):
            blur = blur + ky[dy] * hacc[:, dy:dy + H, :]
        center = pad_ref[:, ph:ph + H, pw:pw + W].astype(jnp.float32)
        out_ref[...] = (2.0 * center - blur).astype(out_ref.dtype)

    out = pl.pallas_call(
        kernel,
        out_shape=jax.ShapeDtypeStruct((N, H, W), image.dtype),
        grid_spec=pltpu.PrefetchScalarGridSpec(
            num_scalar_prefetch=0,
            grid=grid,
            in_specs=[pl.BlockSpec((tb, Hp, Wp), lambda n: (n, 0, 0))],
            out_specs=pl.BlockSpec((tb, H, W), lambda n: (n, 0, 0)),
        ),
        compiler_params=pltpu.CompilerParams(
            dimension_semantics=("parallel",),
            vmem_limit_bytes=32 * 1024 * 1024,
        ),
    )(padded)

    return out.reshape(B, C, H, W)


def _reference(image, kernel_size=(3, 3), sigma=(1.5, 1.5), border_type="reflect"):
    # Pure-JAX reference (full 2-D tap loop, no Pallas).
    B, C, H, W = image.shape
    kh, kw = kernel_size
    ph, pw = kh // 2, kw // 2
    ky = _gaussian_kernel1d(kh, float(sigma[0]))
    kx = _gaussian_kernel1d(kw, float(sigma[1]))
    w2 = np.outer(ky, kx)
    planes = image.reshape(B * C, H, W)
    padded = jnp.pad(planes, ((0, 0), (ph, ph), (pw, pw)),
                     mode=_PAD_MODE[border_type])
    blur = jnp.zeros_like(planes)
    for dy in range(kh):
        for dx in range(kw):
            blur = blur + float(w2[dy, dx]) * padded[:, dy:dy + H, dx:dx + W]
    return (2.0 * planes - blur).reshape(B, C, H, W)


if __name__ == "__main__":
    key = jax.random.PRNGKey(0)
    B, C, H, W = 2, 4, 16, 16
    x = jax.random.uniform(key, (B, C, H, W), dtype=jnp.float32)

    out = unsharp_mask_pallas(x, kernel_size=(3, 3), sigma=(1.5, 1.5),
                              border_type="reflect")
    out = jax.block_until_ready(out)

    ref = _reference(x, (3, 3), (1.5, 1.5), "reflect")
    assert out.shape == (B, C, H, W)
    np.testing.assert_allclose(np.asarray(out), np.asarray(ref),
                               rtol=1e-5, atol=1e-5)
    print("KERNEL_OK")
</pallas_src>

<mosaic_0001>
module attributes {stable_mosaic.version = 11 : i64} {
  func.func @kernel(%arg0: i32, %arg1: memref<4x18x18xf32, #tpu.memory_space<vmem>>, %arg2: memref<4x16x16xf32, #tpu.memory_space<vmem>>) attributes {dimension_semantics = [#tpu.dimension_semantics<parallel>], iteration_bounds = array<i64: 2>, scalar_prefetch = 0 : i64, scratch_operands = 0 : i64, tpu.core_type = #tpu.core_type<tc>, window_params = [{transform_indices = @transform_0, window_bounds = array<i64: 4, 18, 18>}, {transform_indices = @transform_1, window_bounds = array<i64: 4, 16, 16>}]} {
    %c0 = arith.constant 0 : index
    %c0_0 = arith.constant 0 : index
    %c0_1 = arith.constant 0 : index
    %0 = vector.load %arg1[%c0, %c0_0, %c0_1] : memref<4x18x18xf32, #tpu.memory_space<vmem>>, vector<4x18x16xf32>
    %cst = arith.constant 0.307801336 : f32
    %1 = vector.broadcast %cst : f32 to vector<4x18x16xf32>
    %2 = arith.mulf %1, %0 : vector<4x18x16xf32>
    %c0_2 = arith.constant 0 : index
    %c0_3 = arith.constant 0 : index
    %c1 = arith.constant 1 : index
    %3 = vector.load %arg1[%c0_2, %c0_3, %c1] : memref<4x18x18xf32, #tpu.memory_space<vmem>>, vector<4x18x16xf32>
    %cst_4 = arith.constant 0.384397328 : f32
    %4 = vector.broadcast %cst_4 : f32 to vector<4x18x16xf32>
    %5 = arith.mulf %4, %3 : vector<4x18x16xf32>
    %6 = arith.addf %2, %5 : vector<4x18x16xf32>
    %c0_5 = arith.constant 0 : index
    %c0_6 = arith.constant 0 : index
    %c2 = arith.constant 2 : index
    %7 = vector.load %arg1[%c0_5, %c0_6, %c2] : memref<4x18x18xf32, #tpu.memory_space<vmem>>, vector<4x18x16xf32>
    %cst_7 = arith.constant 0.307801336 : f32
    %8 = vector.broadcast %cst_7 : f32 to vector<4x18x16xf32>
    %9 = arith.mulf %8, %7 : vector<4x18x16xf32>
    %10 = arith.addf %6, %9 : vector<4x18x16xf32>
    %11 = vector.extract_strided_slice %10 {offsets = [0, 0, 0], sizes = [4, 16, 16], strides = [1, 1, 1]} : vector<4x18x16xf32> to vector<4x16x16xf32>
    %cst_8 = arith.constant 0.307801336 : f32
    %12 = vector.broadcast %cst_8 : f32 to vector<4x16x16xf32>
    %13 = arith.mulf %12, %11 : vector<4x16x16xf32>
    %14 = vector.extract_strided_slice %10 {offsets = [0, 1, 0], sizes = [4, 16, 16], strides = [1, 1, 1]} : vector<4x18x16xf32> to vector<4x16x16xf32>
    %cst_9 = arith.constant 0.384397328 : f32
    %15 = vector.broadcast %cst_9 : f32 to vector<4x16x16xf32>
    %16 = arith.mulf %15, %14 : vector<4x16x16xf32>
    %17 = arith.addf %13, %16 : vector<4x16x16xf32>
    %18 = vector.extract_strided_slice %10 {offsets = [0, 2, 0], sizes = [4, 16, 16], strides = [1, 1, 1]} : vector<4x18x16xf32> to vector<4x16x16xf32>
    %cst_10 = arith.constant 0.307801336 : f32
    %19 = vector.broadcast %cst_10 : f32 to vector<4x16x16xf32>
    %20 = arith.mulf %19, %18 : vector<4x16x16xf32>
    %21 = arith.addf %17, %20 : vector<4x16x16xf32>
    %c0_11 = arith.constant 0 : index
    %c1_12 = arith.constant 1 : index
    %c1_13 = arith.constant 1 : index
    %22 = vector.load %arg1[%c0_11, %c1_12, %c1_13] : memref<4x18x18xf32, #tpu.memory_space<vmem>>, vector<4x16x16xf32>
    %cst_14 = arith.constant 2.000000e+00 : f32
    %23 = vector.broadcast %cst_14 : f32 to vector<4x16x16xf32>
    %24 = arith.mulf %23, %22 : vector<4x16x16xf32>
    %25 = arith.subf %24, %21 : vector<4x16x16xf32>
    %c0_15 = arith.constant 0 : index
    %c0_16 = arith.constant 0 : index
    %c0_17 = arith.constant 0 : index
    %26 = vector.load %arg2[%c0_15, %c0_16, %c0_17] : memref<4x16x16xf32, #tpu.memory_space<vmem>>, vector<4x16x16xf32>
    tpu.vector_store %arg2[%c0_15, %c0_16, %c0_17], %25 {strides = array<i32>} : memref<4x16x16xf32, #tpu.memory_space<vmem>>, vector<4x16x16xf32>,
    return
  }
  func.func @transform_0(%arg0: i32) -> (i32, i32, i32) {
    %c0_i32 = arith.constant 0 : i32
    %c0_i32_0 = arith.constant 0 : i32
    %c0_i32_1 = arith.constant 0 : i32
    return %arg0, %c0_i32, %c0_i32_0 : i32, i32, i32
  }
  func.func @transform_1(%arg0: i32) -> (i32, i32, i32) {
    %c0_i32 = arith.constant 0 : i32
    %c0_i32_0 = arith.constant 0 : i32
    %c0_i32_1 = arith.constant 0 : i32
    return %arg0, %c0_i32, %c0_i32_0 : i32, i32, i32
  }
}

</mosaic_0001>

<llo_original>
// kernel: tpu_custom_call.1
$region0: #{tpu_custom_call.1}
  #allocation0 [shape = 'u32[]', space=smem, size = 0x4, offset = 0x4, fixed_abs, tag = 'smem constant byte address 0x4 - core index']
  #allocation1 [shape = 'u32[144,128]{1,0:T(1,128)}', space=vmem, size = 0x12000, scoped, tag = 'internal scratch']
  %s0 = inlined_call_operand.vmem [shape: f32[8,18,18], index: 0, kind: input, shape index: {}]
  %s1 = inlined_call_operand.hbm [shape: f32[8,16,16], index: 1, kind: output, shape index: {}]
  %s2 = sld [smem:[#allocation0]]
  $region37: #{tpu_custom_call.1} parent=0
    _
  %s4 = ssub.s32 1, %s2
  %s5 = scalar_select 0, %s4, %s2
  $region1: #{tpu_custom_call.1} parent=0
    #allocation2 [shape = 'u8[65536]{0}', space=vmem, size = 0x10000, scoped, tag = 'output window, operand 0']
    #allocation3 [shape = 's32[2]{0}', space=sflag, size = 0x8, scoped, tag = 'scoped memory for tpu_custom_call.1']
    %6 = vsyncpa [#allocation3], 0
    %s7 = scalar_lea.sflag [#allocation3], 1
    %8 = vsyncpa %s7, 0
    loop: start=0, step=1, limit=4
    $region2: #{tpu_custom_call.1} parent=1 // loop_pre_header
      _
    $region3: #{tpu_custom_call.1} parent=1 // loop_header
      %s10 = sphi 0, %s14
      %p11 = scmp.ge.s32.totalorder %s10, 4
      %s20 = sphi 0, %s22
      %s23 = sphi 0, %s20
      %s24 = sphi 0, %s23
      %s40 = sphi 0, %s24
      %s46 = sphi 0, %s48
      %s49 = sphi 0, %s46
      %s50 = sphi 0, %s49
      %s66 = sphi 0, %s50
    $region4: #{tpu_custom_call.1} parent=1 // loop_header_branch
      %13 = sbr.rel (%p11) target = $region8
    $region5: #{tpu_custom_call.1} parent=1 // loop_body
      %s15 = ssub.s32 %s10, 1
      %s16 = ssub.s32 %s10, 2
      %s17 = sadd.s32 %s10, 1
      %s18 = ssub.s32 %s10, %s17
      %p19 = scmp.eq.s32.totalorder %s18, 0
      %s21 = sadd.s32 %s20, 1
      %s22 = scalar_select %p19, %s20, %s21
      %p25 = pneg %p19
      %p26 = scmp.eq.s32.totalorder %s10, 1
      %p27 = por %p25, %p26
      %p28 = scmp.ne.s32.totalorder %s20, %s23
      %p29 = scmp.eq.s32.totalorder %s10, 0
      %p30 = por %p28, %p29
      %p31 = scmp.ne.s32.totalorder %s20, %s23
      %p32 = scmp.eq.s32.totalorder %s15, 1
      %p33 = por %p31, %p32
      %p34 = scmp.ne.s32.totalorder %s23, %s24
      %p35 = scmp.eq.s32.totalorder %s15, 0
      %p36 = por %p34, %p35
      %p37 = scmp.ne.s32.totalorder %s23, %s24
      %p38 = scmp.eq.s32.totalorder %s16, 1
      %p39 = por %p37, %p38
      %p41 = scmp.ne.s32.totalorder %s24, %s40
      %p42 = scmp.eq.s32.totalorder %s16, 0
      %p43 = por %p41, %p42
      %s44 = ssub.s32 %s10, %s17
      %p45 = scmp.eq.s32.totalorder %s44, 0
      %s47 = sadd.s32 %s46, 1
      %s48 = scalar_select %p45, %s46, %s47
      %p51 = pneg %p45
      %p52 = scmp.eq.s32.totalorder %s10, 1
      %p53 = por %p51, %p52
      %p54 = scmp.ne.s32.totalorder %s46, %s49
      %p55 = scmp.eq.s32.totalorder %s10, 0
      %p56 = por %p54, %p55
      %p57 = scmp.ne.s32.totalorder %s46, %s49
      %p58 = scmp.eq.s32.totalorder %s15, 1
      %p59 = por %p57, %p58
      %p60 = scmp.ne.s32.totalorder %s49, %s50
      %p61 = scmp.eq.s32.totalorder %s15, 0
      %p62 = por %p60, %p61
      %p63 = scmp.ne.s32.totalorder %s49, %s50
      %p64 = scmp.eq.s32.totalorder %s16, 1
      %p65 = por %p63, %p64
      %p67 = scmp.ne.s32.totalorder %s50, %s66
      %p68 = scmp.eq.s32.totalorder %s16, 0
      %p69 = por %p67, %p68
      %p70 = scmp.le.s32.totalorder 1, %s10
      %p71 = scmp.lt.s32.totalorder %s10, 3
      %p72 = pnand %p70, %p71
      %p73 = pneg %p72
      // Predicated region
      $region9: #{tpu_custom_call.1} parent=5 // pred_check
        _
      $region10: #{tpu_custom_call.1} parent=5 // pred_check_branch
        %75 = sbr.rel (%p72) target = $region12
      $region11: #{tpu_custom_call.1} parent=5 // pred_region
        %s76 = ssub.s32 %s10, 1
      $region12: #{tpu_custom_call.1} parent=5 // pred_fallthru
        _
      %p77 = scmp.lt.s32.totalorder %s10, 2
      // Predicated region
      $region13: #{tpu_custom_call.1} parent=5 // pred_check
        %p78 = pneg %p77
      $region14: #{tpu_custom_call.1} parent=5 // pred_check_branch
        %80 = sbr.rel (%p78) target = $region16
      $region15: #{tpu_custom_call.1} parent=5 // pred_region
        // Predicated region
        $region17: #{tpu_custom_call.1} parent=15 // pred_check
          %p81 = pneg %p30
        $region18: #{tpu_custom_call.1} parent=15 // pred_check_branch
          %83 = sbr.rel (%p81) target = $region20
        $region19: #{tpu_custom_call.1} parent=15 // pred_region
          %s84 = smul.u32 4, %s10
          %p85 = scmp.lt.s32.totalorder %s84, 7
          %s86 = scalar_select %p85, %s84, 7
          %s87 = smul.addr %s86, 3
          %s88 = smul.addr %s87, 8
          %s89 = scalar_lea.vmem %s0, %s88
          %s90 = smul.u32 4, %s10
        $region20: #{tpu_custom_call.1} parent=15 // pred_fallthru
          _
      $region16: #{tpu_custom_call.1} parent=5 // pred_fallthru
        _
      %p91 = scmp.le.s32.totalorder 1, %s10
      %p92 = scmp.lt.s32.totalorder %s10, 3
      %p93 = pnand %p91, %p92
      %p94 = pneg %p93
      // Predicated region
      $region21: #{tpu_custom_call.1} parent=5 // pred_check
        _
      $region22: #{tpu_custom_call.1} parent=5 // pred_check_branch
        %96 = sbr.rel (%p93) target = $region24
      $region23: #{tpu_custom_call.1} parent=5 // pred_region
        %s97 = ssub.s32 %s10, 1
        %s98 = smul.u32 4, %s15
        %p99 = scmp.lt.s32.totalorder %s98, 7
        %s100 = scalar_select %p99, %s98, 7
        %s101 = smul.addr %s100, 3
        %s102 = smul.addr %s101, 8
        %s103 = scalar_lea.vmem %s0, %s102
        %p104 = pneg %p36
        %p105 = pneg %p33
        %p106 = pneg %p62
        %p107 = pneg %p59
        %s108 = sand.u32 %s49, 1
        %s109 = scalar_lea.sflag [#allocation3], %s108
        %s110 = sand.u32 %s49, 1
        %s111 = smul.addr %s110, 64
        %s112 = scalar_lea.vmem [#allocation2], %s111
        %s113 = smul.u32 4, %s15
        %p114 = scmp.lt.s32.totalorder %s113, 7
        %s115 = scalar_select %p114, %s113, 7
        %s116 = smul.addr %s115, 3
        %s117 = smul.addr %s116, 8
        %s118 = scalar_lea.vmem %s0, %s117
        %s119 = smul.u32 4, %s15
        %s120 = smul.u32 4, %s15
        %v121 = vld [vmem:[%s118] sm:$0xff]
        %v122 = vld [vmem:[%s118 + $0x8] sm:$0xff]
        %v123 = vld [vmem:[%s118 + $0x10] sm:$0x3]
        %v124 = vld [vmem:[%s118 + $0x18] sm:$0xff]
        %v125 = vld [vmem:[%s118 + $0x20] sm:$0xff]
        %v126 = vld [vmem:[%s118 + $0x28] sm:$0x3]
        %v127 = vld [vmem:[%s118 + $0x30] sm:$0xff]
        %v128 = vld [vmem:[%s118 + $0x38] sm:$0xff]
        %v129 = vld [vmem:[%s118 + $0x40] sm:$0x3]
        %v130 = vld [vmem:[%s118 + $0x48] sm:$0xff]
        %v131 = vld [vmem:[%s118 + $0x50] sm:$0xff]
        %v132 = vld [vmem:[%s118 + $0x58] sm:$0x3]
        %v133 = vmul.f32 %v121, 0.30780134
        %v134 = vmul.f32 %v122, 0.30780134
        %v135 = vmul.f32 %v123, 0.30780134
        %v136 = vmul.f32 %v124, 0.30780134
        %v137 = vmul.f32 %v125, 0.30780134
        %v138 = vmul.f32 %v126, 0.30780134
        %v139 = vmul.f32 %v127, 0.30780134
        %v140 = vmul.f32 %v128, 0.30780134
        %v141 = vmul.f32 %v129, 0.30780134
        %v142 = vmul.f32 %v130, 0.30780134
        %v143 = vmul.f32 %v131, 0.30780134
        %v144 = vmul.f32 %v132, 0.30780134
        %v145 = vmul.f32 %v121, 0.38439733
        %v146 = vmul.f32 %v122, 0.38439733
        %v147 = vmul.f32 %v123, 0.38439733
        %v148 = vmul.f32 %v124, 0.38439733
        %v149 = vmul.f32 %v125, 0.38439733
        %v150 = vmul.f32 %v126, 0.38439733
        %v151 = vmul.f32 %v127, 0.38439733
        %v152 = vmul.f32 %v128, 0.38439733
        %v153 = vmul.f32 %v129, 0.38439733
        %v154 = vmul.f32 %v130, 0.38439733
        %v155 = vmul.f32 %v131, 0.38439733
        %v156 = vmul.f32 %v132, 0.38439733
        %169 = vrot.lane.b32.xlu0 %v145, 127
        %v170 = vpop.permute.xlu0 %169
        %171 = vrot.lane.b32.xlu0 %v146, 127
        %v172 = vpop.permute.xlu0 %171
        %173 = vrot.lane.b32.xlu0 %v147, 127
        %v174 = vpop.permute.xlu0 %173
        %175 = vrot.lane.b32.xlu0 %v148, 127
        %v176 = vpop.permute.xlu0 %175
        %177 = vrot.lane.b32.xlu0 %v149, 127
        %v178 = vpop.permute.xlu0 %177
        %179 = vrot.lane.b32.xlu0 %v150, 127
        %v180 = vpop.permute.xlu0 %179
        %181 = vrot.lane.b32.xlu0 %v151, 127
        %v182 = vpop.permute.xlu0 %181
        %183 = vrot.lane.b32.xlu0 %v152, 127
        %v184 = vpop.permute.xlu0 %183
        %185 = vrot.lane.b32.xlu0 %v153, 127
        %v186 = vpop.permute.xlu0 %185
        %187 = vrot.lane.b32.xlu0 %v154, 127
        %v188 = vpop.permute.xlu0 %187
        %189 = vrot.lane.b32.xlu0 %v155, 127
        %v190 = vpop.permute.xlu0 %189
        %191 = vrot.lane.b32.xlu0 %v156, 127
        %v192 = vpop.permute.xlu0 %191
        %v205 = vadd.f32 %v133, %v170
        %v206 = vadd.f32 %v134, %v172
        %v207 = vadd.f32 %v135, %v174
        %v208 = vadd.f32 %v136, %v176
        %v209 = vadd.f32 %v137, %v178
        %v210 = vadd.f32 %v138, %v180
        %v211 = vadd.f32 %v139, %v182
        %v212 = vadd.f32 %v140, %v184
        %v213 = vadd.f32 %v141, %v186
        %v214 = vadd.f32 %v142, %v188
        %v215 = vadd.f32 %v143, %v190
        %v216 = vadd.f32 %v144, %v192
        %229 = vrot.lane.b32.xlu0 %v133, 126
        %v230 = vpop.permute.xlu0 %229
        %231 = vrot.lane.b32.xlu0 %v134, 126
        %v232 = vpop.permute.xlu0 %231
        %233 = vrot.lane.b32.xlu0 %v135, 126
        %v234 = vpop.permute.xlu0 %233
        %235 = vrot.lane.b32.xlu0 %v136, 126
        %v236 = vpop.permute.xlu0 %235
        %237 = vrot.lane.b32.xlu0 %v137, 126
        %v238 = vpop.permute.xlu0 %237
        %239 = vrot.lane.b32.xlu0 %v138, 126
        %v240 = vpop.permute.xlu0 %239
        %241 = vrot.lane.b32.xlu0 %v139, 126
        %v242 = vpop.permute.xlu0 %241
        %243 = vrot.lane.b32.xlu0 %v140, 126
        %v244 = vpop.permute.xlu0 %243
        %245 = vrot.lane.b32.xlu0 %v141, 126
        %v246 = vpop.permute.xlu0 %245
        %247 = vrot.lane.b32.xlu0 %v142, 126
        %v248 = vpop.permute.xlu0 %247
        %249 = vrot.lane.b32.xlu0 %v143, 126
        %v250 = vpop.permute.xlu0 %249
        %251 = vrot.lane.b32.xlu0 %v144, 126
        %v252 = vpop.permute.xlu0 %251
        %v265 = vadd.f32 %v205, %v230
        %v266 = vadd.f32 %v206, %v232
        %v267 = vadd.f32 %v207, %v234
        %v268 = vadd.f32 %v208, %v236
        %v269 = vadd.f32 %v209, %v238
        %v270 = vadd.f32 %v210, %v240
        %v271 = vadd.f32 %v211, %v242
        %v272 = vadd.f32 %v212, %v244
        %v273 = vadd.f32 %v213, %v246
        %v274 = vadd.f32 %v214, %v248
        %v275 = vadd.f32 %v215, %v250
        %v276 = vadd.f32 %v216, %v252
        %v277 = vmul.f32 %v265, 0.30780134
        %v278 = vmul.f32 %v266, 0.30780134
        %v279 = vmul.f32 %v268, 0.30780134
        %v280 = vmul.f32 %v269, 0.30780134
        %v281 = vmul.f32 %v271, 0.30780134
        %v282 = vmul.f32 %v272, 0.30780134
        %v283 = vmul.f32 %v274, 0.30780134
        %v284 = vmul.f32 %v275, 0.30780134
        %v285 = vmul.f32 %v265, 0.38439733
        %v286 = vmul.f32 %v266, 0.38439733
        %v287 = vmul.f32 %v267, 0.38439733
        %v288 = vmul.f32 %v268, 0.38439733
        %v289 = vmul.f32 %v269, 0.38439733
        %v290 = vmul.f32 %v270, 0.38439733
        %v291 = vmul.f32 %v271, 0.38439733
        %v292 = vmul.f32 %v272, 0.38439733
        %v293 = vmul.f32 %v273, 0.38439733
        %v294 = vmul.f32 %v274, 0.38439733
        %v295 = vmul.f32 %v275, 0.38439733
        %v296 = vmul.f32 %v276, 0.38439733
        %vm309 = vcmask 1046528
        %v310 = vrot.slane %v285, 1
        %v311 = vrot.slane %v286, 1
        %v312 = vsel %vm309, %v310, %v311
        %v313 = vrot.slane %v287, 1
        %v314 = vsel %vm309, %v311, %v313
        %v315 = vrot.slane %v288, 1
        %v316 = vrot.slane %v289, 1
        %v317 = vsel %vm309, %v315, %v316
        %v318 = vrot.slane %v290, 1
        %v319 = vsel %vm309, %v316, %v318
        %v320 = vrot.slane %v291, 1
        %v321 = vrot.slane %v292, 1
        %v322 = vsel %vm309, %v320, %v321
        %v323 = vrot.slane %v293, 1
        %v324 = vsel %vm309, %v321, %v323
        %v325 = vrot.slane %v294, 1
        %v326 = vrot.slane %v295, 1
        %v327 = vsel %vm309, %v325, %v326
        %v328 = vrot.slane %v296, 1
        %v329 = vsel %vm309, %v326, %v328
        %v338 = vadd.f32 %v277, %v312
        %v339 = vadd.f32 %v278, %v314
        %v340 = vadd.f32 %v279, %v317
        %v341 = vadd.f32 %v280, %v319
        %v342 = vadd.f32 %v281, %v322
        %v343 = vadd.f32 %v282, %v324
        %v344 = vadd.f32 %v283, %v327
        %v345 = vadd.f32 %v284, %v329
        %v346 = vmul.f32 %v267, 0.30780134
        %v347 = vmul.f32 %v270, 0.30780134
        %v348 = vmul.f32 %v273, 0.30780134
        %v349 = vmul.f32 %v276, 0.30780134
        %vm362 = vcmask 1045504
        %v363 = vrot.slane %v277, 2
        %v364 = vrot.slane %v278, 2
        %v365 = vsel %vm362, %v363, %v364
        %v366 = vrot.slane %v346, 2
        %v367 = vsel %vm362, %v364, %v366
        %v368 = vrot.slane %v279, 2
        %v369 = vrot.slane %v280, 2
        %v370 = vsel %vm362, %v368, %v369
        %v371 = vrot.slane %v347, 2
        %v372 = vsel %vm362, %v369, %v371
        %v373 = vrot.slane %v281, 2
        %v374 = vrot.slane %v282, 2
        %v375 = vsel %vm362, %v373, %v374
        %v376 = vrot.slane %v348, 2
        %v377 = vsel %vm362, %v374, %v376
        %v378 = vrot.slane %v283, 2
        %v379 = vrot.slane %v284, 2
        %v380 = vsel %vm362, %v378, %v379
        %v381 = vrot.slane %v349, 2
        %v382 = vsel %vm362, %v379, %v381
        %v391 = vadd.f32 %v338, %v365
        %v392 = vadd.f32 %v339, %v367
        %v393 = vadd.f32 %v340, %v370
        %v394 = vadd.f32 %v341, %v372
        %v395 = vadd.f32 %v342, %v375
        %v396 = vadd.f32 %v343, %v377
        %v397 = vadd.f32 %v344, %v380
        %v398 = vadd.f32 %v345, %v382
        %v399 = vld [vmem:[%s118 + $0x1] sm:$0xff]
        %v400 = vld [vmem:[%s118 + $0x9] sm:$0xff]
        %v401 = vld [vmem:[%s118 + $0x19] sm:$0xff]
        %v402 = vld [vmem:[%s118 + $0x21] sm:$0xff]
        %v403 = vld [vmem:[%s118 + $0x31] sm:$0xff]
        %v404 = vld [vmem:[%s118 + $0x39] sm:$0xff]
        %v405 = vld [vmem:[%s118 + $0x49] sm:$0xff]
        %v406 = vld [vmem:[%s118 + $0x51] sm:$0xff]
        %v407 = vmul.f32 %v399, 2.0
        %v408 = vmul.f32 %v400, 2.0
        %v409 = vmul.f32 %v401, 2.0
        %v410 = vmul.f32 %v402, 2.0
        %v411 = vmul.f32 %v403, 2.0
        %v412 = vmul.f32 %v404, 2.0
        %v413 = vmul.f32 %v405, 2.0
        %v414 = vmul.f32 %v406, 2.0
        %423 = vrot.lane.b32.xlu0 %v391, 1
        %v424 = vpop.permute.xlu0 %423
        %425 = vrot.lane.b32.xlu0 %v392, 1
        %v426 = vpop.permute.xlu0 %425
        %427 = vrot.lane.b32.xlu0 %v393, 1
        %v428 = vpop.permute.xlu0 %427
        %429 = vrot.lane.b32.xlu0 %v394, 1
        %v430 = vpop.permute.xlu0 %429
        %431 = vrot.lane.b32.xlu0 %v395, 1
        %v432 = vpop.permute.xlu0 %431
        %433 = vrot.lane.b32.xlu0 %v396, 1
        %v434 = vpop.permute.xlu0 %433
        %435 = vrot.lane.b32.xlu0 %v397, 1
        %v436 = vpop.permute.xlu0 %435
        %437 = vrot.lane.b32.xlu0 %v398, 1
        %v438 = vpop.permute.xlu0 %437
        %v447 = vsub.f32 %v407, %v424
        %v448 = vsub.f32 %v408, %v426
        %v449 = vsub.f32 %v409, %v428
        %v450 = vsub.f32 %v410, %v430
        %v451 = vsub.f32 %v411, %v432
        %v452 = vsub.f32 %v412, %v434
        %v453 = vsub.f32 %v413, %v436
        %v454 = vsub.f32 %v414, %v438
        %463 = vrot.lane.b32.xlu0 %v447, 127
        %v464 = vpop.permute.xlu0 %463
        %465 = vrot.lane.b32.xlu0 %v448, 127
        %v466 = vpop.permute.xlu0 %465
        %467 = vrot.lane.b32.xlu0 %v449, 127
        %v468 = vpop.permute.xlu0 %467
        %469 = vrot.lane.b32.xlu0 %v450, 127
        %v470 = vpop.permute.xlu0 %469
        %471 = vrot.lane.b32.xlu0 %v451, 127
        %v472 = vpop.permute.xlu0 %471
        %473 = vrot.lane.b32.xlu0 %v452, 127
        %v474 = vpop.permute.xlu0 %473
        %475 = vrot.lane.b32.xlu0 %v453, 127
        %v476 = vpop.permute.xlu0 %475
        %477 = vrot.lane.b32.xlu0 %v454, 127
        %v478 = vpop.permute.xlu0 %477
        %vm487 = vcmask 130048
        %488 = vst.msk [vmem:[%s112] sm:$0xff] %vm487, %v464
        %489 = vst.msk [vmem:[%s112 + $0x8] sm:$0xff] %vm487, %v466
        %490 = vst.msk [vmem:[%s112 + $0x10] sm:$0xff] %vm487, %v468
        %491 = vst.msk [vmem:[%s112 + $0x18] sm:$0xff] %vm487, %v470
        %492 = vst.msk [vmem:[%s112 + $0x20] sm:$0xff] %vm487, %v472
        %493 = vst.msk [vmem:[%s112 + $0x28] sm:$0xff] %vm487, %v474
        %494 = vst.msk [vmem:[%s112 + $0x30] sm:$0xff] %vm487, %v476
        %495 = vst.msk [vmem:[%s112 + $0x38] sm:$0xff] %vm487, %v478
        %s496 = sand.u32 %s49, 1
        %s497 = scalar_lea.sflag [#allocation3], %s496
        %s498 = sand.u32 %s49, 1
        %s499 = smul.addr %s498, 64
        %s500 = scalar_lea.vmem [#allocation2], %s499
        // Predicated region
        $region25: #{tpu_custom_call.1} parent=23 // pred_check
          %p501 = pneg %p59
        $region26: #{tpu_custom_call.1} parent=23 // pred_check_branch
          %503 = sbr.rel (%p501) target = $region28
        $region27: #{tpu_custom_call.1} parent=23 // pred_region
          %s504 = smul.u32 4, %s15
          %s506 = ssub.s32 1024, 1024
          %507 = vsyncadd %s497, %s506
          %s508 = smul.addr %s504, 2
          %s509 = smul.addr %s508, 128
          %s510 = scalar_lea.hbm %s1, %s509
          %s511 = sshll.u32 %s500, 4
          %s512 = int_to_ptr.vmem [resolvable:$true] %s511
          %517 = dma.vmem_to_hbm [thread:$0]  %s512, 1024, %s510, %s497, 128, 128, 8
        $region28: #{tpu_custom_call.1} parent=23 // pred_fallthru
          _
      $region24: #{tpu_custom_call.1} parent=5 // pred_fallthru
        _
      %p518 = scmp.le.s32.totalorder 2, %s10
      // Predicated region
      $region29: #{tpu_custom_call.1} parent=5 // pred_check
        %p519 = pneg %p518
      $region30: #{tpu_custom_call.1} parent=5 // pred_check_branch
        %521 = sbr.rel (%p519) target = $region32
      $region31: #{tpu_custom_call.1} parent=5 // pred_region
        %s522 = ssub.s32 %s10, 2
        // Predicated region
        $region33: #{tpu_custom_call.1} parent=31 // pred_check
          %p523 = pneg %p65
        $region34: #{tpu_custom_call.1} parent=31 // pred_check_branch
          %525 = sbr.rel (%p523) target = $region36
        $region35: #{tpu_custom_call.1} parent=31 // pred_region
          %s526 = sand.u32 %s50, 1
          %s527 = scalar_lea.sflag [#allocation3], %s526
          %s528 = sand.u32 %s50, 1
          %s529 = smul.addr %s528, 64
          %s530 = scalar_lea.vmem [#allocation2], %s529
          %531 = dma.done %s527, 1024
        $region36: #{tpu_custom_call.1} parent=31 // pred_fallthru
          _
      $region32: #{tpu_custom_call.1} parent=5 // pred_fallthru
        _
    $region6: #{tpu_custom_call.1} parent=1 // loop_footer
      %s14 = sadd.s32 1, %s10
    $region7: #{tpu_custom_call.1} parent=1 // loop_footer_branch
      %9 = sbr.rel target = $region3
    $region8: #{tpu_custom_call.1} parent=1 // loop_exit
      _
    %532 = vsyncpa [#allocation3], 1
    %s533 = scalar_lea.sflag [#allocation3], 1
    %534 = vsyncpa %s533, 1

</llo_original>
